<compile_context>
chip_gen: v5e
topology: v5e:2x2
jax: 0.10.0
libtpu: 0.0.40
codegen_flags: <defaults>
</compile_context>

<pallas_src>
import functools

import jax
import jax.numpy as jnp
from jax.experimental import pallas as pl
from jax.experimental.pallas import tpu as pltpu

_LANE = 128      # vreg lane width
_SUBLANE = 8     # f32 sublane count


def _round_up(x, m):
    return (x + m - 1) // m * m


def linear_kernel(x_ref, w_ref, b_ref, o_ref):
    # One MXU pass on a lane-dense (tm, Kp) @ (Kp, Np) tile with f32
    # accumulation; the bias add is a single VPU add hidden under MXU/DMA.
    acc = jnp.dot(x_ref[...], w_ref[...], preferred_element_type=jnp.float32)
    o_ref[...] = (acc + b_ref[...]).astype(o_ref.dtype)


@functools.partial(jax.jit, static_argnames=("block_rows",))
def simple_params_forward(x, w, b, *, block_rows=512):
    """y = x @ w + b  (equivalent to PyTorch nn.Linear(20, 30)).

    x: (B, K) activations; w: (K, N) weight (transposed vs. torch's (N, K)
    storage); b: (1, N) bias. Pads K/N/B to vreg-aligned sizes so every
    load/store is unmasked and lane-dense, tiles the batch dim for pipelining
    and megacore sharding, and slices the logical (B, N) result back out.
    """
    B, K = x.shape
    Kw, N = w.shape
    assert K == Kw and b.shape == (1, N)

    # --- vreg-aligned padded shapes (zero padding is exact for the dot). ---
    # NOTE: in a real model the padded weight/bias would be materialized once
    # at parameter-load time, not re-padded on every call.
    Kp = _round_up(K, _LANE)      # lane dim of x, sublane dim of w
    Np = _round_up(N, _LANE)      # lane dim of w / b / y -> unmasked vst
    Bp = _round_up(B, _SUBLANE)   # sublane dim of x / y
    tm = min(block_rows, Bp)      # batch tile, multiple of 8
    Bp = _round_up(Bp, tm)

    xp = jnp.pad(x, ((0, Bp - B), (0, Kp - K)))
    wp = jnp.pad(w, ((0, Kp - K), (0, Np - N)))
    bp = jnp.pad(b, ((0, 0), (0, Np - N)))

    cost = pl.CostEstimate(
        flops=2 * B * K * N,
        transcendentals=0,
        bytes_accessed=(x.size + w.size + b.size + B * N) * x.dtype.itemsize,
    )

    yp = pl.pallas_call(
        linear_kernel,
        out_shape=jax.ShapeDtypeStruct((Bp, Np), x.dtype),
        grid_spec=pltpu.PrefetchScalarGridSpec(
            num_scalar_prefetch=0,
            grid=(Bp // tm,),
            in_specs=[
                pl.BlockSpec((tm, Kp), lambda i: (i, 0)),  # x: streams with batch
                pl.BlockSpec((Kp, Np), lambda i: (0, 0)),  # w: resident across grid
                pl.BlockSpec((1, Np), lambda i: (0, 0)),   # b: resident across grid
            ],
            out_specs=pl.BlockSpec((tm, Np), lambda i: (i, 0)),
        ),
        compiler_params=pltpu.CompilerParams(
            # Batch tiles are independent -> shard across TensorCores (v7x).
            dimension_semantics=("parallel",),
        ),
        cost_estimate=cost,
    )(xp, wp, bp)

    # Slice the logical result back out of the lane-padded buffer.
    return yp[:B, :N]


if __name__ == "__main__":
    key = jax.random.PRNGKey(0)
    kx, kw, kb = jax.random.split(key, 3)

    B, IN, OUT = 2, 20, 30

    # Deterministic parameter init (mimicking nn.Linear's uniform range).
    bound = 1.0 / (IN ** 0.5)
    # PyTorch stores weight as (OUT, IN); we keep the transposed (IN, OUT)
    # layout so the kernel does x @ w directly.
    w = jax.random.uniform(kw, (IN, OUT), jnp.float32, minval=-bound, maxval=bound)
    b = jax.random.uniform(kb, (1, OUT), jnp.float32, minval=-bound, maxval=bound)
    x = jax.random.normal(kx, (B, IN), jnp.float32)

    y = simple_params_forward(x, w, b)
    jax.block_until_ready(y)

    # Correctness check against plain JAX reference.
    y_ref = x @ w + b
    assert y.shape == (B, OUT)
    assert jnp.allclose(y, y_ref, atol=1e-5, rtol=1e-5)

    print("KERNEL_OK")
</pallas_src>

<mosaic_0001>
module attributes {stable_mosaic.version = 11 : i64} {
  func.func @linear_kernel(%arg0: i32, %arg1: memref<8x128xf32, #tpu.memory_space<vmem>>, %arg2: memref<128x128xf32, #tpu.memory_space<vmem>>, %arg3: memref<1x128xf32, #tpu.memory_space<vmem>>, %arg4: memref<8x128xf32, #tpu.memory_space<vmem>>) attributes {dimension_semantics = [#tpu.dimension_semantics<parallel>], iteration_bounds = array<i64: 1>, scalar_prefetch = 0 : i64, scratch_operands = 0 : i64, tpu.core_type = #tpu.core_type<tc>, window_params = [{transform_indices = @transform_0, window_bounds = array<i64: 8, 128>}, {pipeline_mode = #tpu.pipeline_mode<synchronous>, transform_indices = @transform_1, window_bounds = array<i64: 128, 128>}, {pipeline_mode = #tpu.pipeline_mode<synchronous>, transform_indices = @transform_2, window_bounds = array<i64: 1, 128>}, {transform_indices = @transform_3, window_bounds = array<i64: 8, 128>}]} {
    %c0 = arith.constant 0 : index
    %c0_0 = arith.constant 0 : index
    %0 = vector.load %arg1[%c0, %c0_0] : memref<8x128xf32, #tpu.memory_space<vmem>>, vector<8x128xf32>
    %c0_1 = arith.constant 0 : index
    %c0_2 = arith.constant 0 : index
    %1 = vector.load %arg2[%c0_1, %c0_2] : memref<128x128xf32, #tpu.memory_space<vmem>>, vector<128x128xf32>
    %cst = arith.constant dense<0.000000e+00> : vector<8x128xf32>
    %2 = tpu.matmul %0, %1, %cst {dimension_numbers = #tpu.dot_dimension_numbers<[1], [0], [0], [1], [0, 0, 1, 1], [], []>} : vector<8x128xf32>, vector<128x128xf32>, vector<8x128xf32> -> vector<8x128xf32>
    %c0_3 = arith.constant 0 : index
    %c0_4 = arith.constant 0 : index
    %3 = vector.load %arg3[%c0_3, %c0_4] : memref<1x128xf32, #tpu.memory_space<vmem>>, vector<1x128xf32>
    %4 = vector.broadcast %3 : vector<1x128xf32> to vector<8x128xf32>
    %5 = arith.addf %2, %4 : vector<8x128xf32>
    %c0_5 = arith.constant 0 : index
    %c0_6 = arith.constant 0 : index
    %6 = vector.load %arg4[%c0_5, %c0_6] : memref<8x128xf32, #tpu.memory_space<vmem>>, vector<8x128xf32>
    tpu.vector_store %arg4[%c0_5, %c0_6], %5 {strides = array<i32>} : memref<8x128xf32, #tpu.memory_space<vmem>>, vector<8x128xf32>,
    return
  }
  func.func @transform_0(%arg0: i32) -> (i32, i32) {
    %c0_i32 = arith.constant 0 : i32
    %c0_i32_0 = arith.constant 0 : i32
    return %arg0, %c0_i32 : i32, i32
  }
  func.func @transform_1(%arg0: i32) -> (i32, i32) {
    %c0_i32 = arith.constant 0 : i32
    %c0_i32_0 = arith.constant 0 : i32
    %c0_i32_1 = arith.constant 0 : i32
    return %c0_i32, %c0_i32_0 : i32, i32
  }
  func.func @transform_2(%arg0: i32) -> (i32, i32) {
    %c0_i32 = arith.constant 0 : i32
    %c0_i32_0 = arith.constant 0 : i32
    %c0_i32_1 = arith.constant 0 : i32
    return %c0_i32, %c0_i32_0 : i32, i32
  }
  func.func @transform_3(%arg0: i32) -> (i32, i32) {
    %c0_i32 = arith.constant 0 : i32
    %c0_i32_0 = arith.constant 0 : i32
    return %arg0, %c0_i32 : i32, i32
  }
}

</mosaic_0001>

<llo_original>
// kernel: simple_params_forward.1
$region0: #{simple_params_forward.1}
  #allocation0 [shape = 'u32[]', space=smem, size = 0x4, offset = 0x4, fixed_abs, tag = 'smem constant byte address 0x4 - core index']
  #allocation1 [shape = 'u32[72,128]{1,0:T(1,128)}', space=vmem, size = 0x9000, scoped, tag = 'internal scratch']
  %s0 = inlined_call_operand.vmem [shape: f32[8,128], index: 0, kind: input, shape index: {}]
  %s1 = inlined_call_operand.vmem [shape: f32[128,128], index: 1, kind: input, shape index: {}]
  %s2 = inlined_call_operand.vmem [shape: f32[1,128], index: 2, kind: input, shape index: {}]
  %s3 = inlined_call_operand.vmem [shape: f32[8,128], index: 3, kind: output, shape index: {}]
  %s4 = sld [smem:[#allocation0]]
  $region22: #{simple_params_forward.1} parent=0
    _
  %s6 = ssub.s32 1, %s4
  %s7 = scalar_select 0, %s6, %s4
  // Predicated region
  $region2: #{simple_params_forward.1} parent=0 // pred_check
    _
  $region3: #{simple_params_forward.1} parent=0 // pred_check_branch
    %9 = sbr.rel (0) target = $region5
  $region4: #{simple_params_forward.1} parent=0 // pred_region
    _
  $region5: #{simple_params_forward.1} parent=0 // pred_fallthru
    _
  // Predicated region
  $region6: #{simple_params_forward.1} parent=0 // pred_check
    _
  $region7: #{simple_params_forward.1} parent=0 // pred_check_branch
    %11 = sbr.rel (0) target = $region9
  $region8: #{simple_params_forward.1} parent=0 // pred_region
    _
  $region9: #{simple_params_forward.1} parent=0 // pred_fallthru
    _
  // Predicated region
  $region10: #{simple_params_forward.1} parent=0 // pred_check
    _
  $region11: #{simple_params_forward.1} parent=0 // pred_check_branch
    %13 = sbr.rel (0) target = $region13
  $region12: #{simple_params_forward.1} parent=0 // pred_region
    _
  $region13: #{simple_params_forward.1} parent=0 // pred_fallthru
    _
  %v14 = vld [vmem:[%s0] sm:$0xff]
  %v15 = vld [vmem:[%s1] sm:$0xff]
  %v16 = vld [vmem:[%s1 + $0x8] sm:$0xff]
  %v17 = vld [vmem:[%s1 + $0x10] sm:$0xff]
  %v18 = vld [vmem:[%s1 + $0x18] sm:$0xff]
  %v19 = vld [vmem:[%s1 + $0x20] sm:$0xff]
  %v20 = vld [vmem:[%s1 + $0x28] sm:$0xff]
  %v21 = vld [vmem:[%s1 + $0x30] sm:$0xff]
  %v22 = vld [vmem:[%s1 + $0x38] sm:$0xff]
  %v23 = vld [vmem:[%s1 + $0x40] sm:$0xff]
  %v24 = vld [vmem:[%s1 + $0x48] sm:$0xff]
  %v25 = vld [vmem:[%s1 + $0x50] sm:$0xff]
  %v26 = vld [vmem:[%s1 + $0x58] sm:$0xff]
  %v27 = vld [vmem:[%s1 + $0x60] sm:$0xff]
  %v28 = vld [vmem:[%s1 + $0x68] sm:$0xff]
  %v29 = vld [vmem:[%s1 + $0x70] sm:$0xff]
  %v30 = vld [vmem:[%s1 + $0x78] sm:$0xff]
  %v31 = vld [vmem:[%s2] sm:$0x1]
  %v33 = vperm.slane %v31, 0
  %35 = vmatpush.msra.mxu0 %v30
  %36 = vmatpush.msra.mxu0 %v29
  %37 = vmatpush.msra.mxu0 %v28
  %38 = vmatpush.msra.mxu0 %v27
  %39 = vmatpush.msra.mxu0 %v26
  %40 = vmatpush.msra.mxu0 %v25
  %41 = vmatpush.msra.mxu0 %v24
  %42 = vmatpush.msra.mxu0 %v23
  %43 = vmatpush.msra.mxu0 %v22
  %44 = vmatpush.msra.mxu0 %v21
  %45 = vmatpush.msra.mxu0 %v20
  %46 = vmatpush.msra.mxu0 %v19
  %47 = vmatpush.msra.mxu0 %v18
  %48 = vmatpush.msra.mxu0 %v17
  %49 = vmatpush.msra.mxu0 %v16
  %50 = vmatpush.msra.mxu0 %v15
  %51 = vmatmul.f32.gmra.mxu0 %v14
  %v52 = vpop.f32.mrf.mxu0
  %v53 = vadd.f32 %v33, %v52
  %54 = vdwg.mxu0
  %55 = vst [vmem:[%s3] sm:$0xff] %v53
  // Predicated region
  $region14: #{simple_params_forward.1} parent=0 // pred_check
    _
  $region15: #{simple_params_forward.1} parent=0 // pred_check_branch
    %57 = sbr.rel (0) target = $region17
  $region16: #{simple_params_forward.1} parent=0 // pred_region
    _
  $region17: #{simple_params_forward.1} parent=0 // pred_fallthru
    _
  // Predicated region
  $region18: #{simple_params_forward.1} parent=0 // pred_check
    _
  $region19: #{simple_params_forward.1} parent=0 // pred_check_branch
    %59 = sbr.rel (0) target = $region21
  $region20: #{simple_params_forward.1} parent=0 // pred_region
    _
  $region21: #{simple_params_forward.1} parent=0 // pred_fallthru
    _

</llo_original>
